<compile_context>
chip_gen: v6e
topology: v6e:2x2x1
jax: 0.10.0
libtpu: 0.0.40
codegen_flags: <defaults>
</compile_context>

<pallas_src>
import jax
import jax.numpy as jnp
from jax.experimental import pallas as pl
from jax.experimental.pallas import tpu as pltpu

_HIDDEN = 512
_LANE = 128
_ROW_ALIGN = 16  # multiple of 8 (f32 sublane) and 16 (bf16 packing)


def _round_up(x, m):
    return (x + m - 1) // m * m


def _cdiv(a, b):
    return -(-a // b)


def _label_net_kernel(x_ref, w1_ref, b1_ref, w2_ref, b2_ref, o_ref):
    # Cast x f32 -> bf16 on the VPU right before the MXU (x is DMA'd as f32).
    x = x_ref[...].astype(jnp.bfloat16)
    # First linear: bf16 x bf16 -> f32 accumulation on the MXU.
    h = jnp.dot(x, w1_ref[...], preferred_element_type=jnp.float32)
    # Bias + ReLU in f32 on the VPU (works on all of v5e/v6e/v7x).
    h = jnp.maximum(h + b1_ref[...], 0.0)
    # Second linear: recast activation to bf16 for the MXU, accumulate f32.
    y = jnp.dot(h.astype(jnp.bfloat16), w2_ref[...],
                preferred_element_type=jnp.float32)
    # Bias + tanh (EUP) only on the real `bit` columns; narrow masked store.
    o_ref[...] = jnp.tanh(y + b2_ref[...]).astype(o_ref.dtype)


def _choose_block_batch(B, target):
    """Balance-chosen batch tile: minimizes zero-row padding and keeps the
    grid >= 2 steps for mid-size batches (v7x megacore)."""
    num_tiles = max(1, _cdiv(B, target))
    if num_tiles == 1 and B >= 2 * _ROW_ALIGN:
        num_tiles = 2  # keep both v7x TensorCores busy for mid-size B
    block = max(_ROW_ALIGN, _round_up(_cdiv(B, num_tiles), _ROW_ALIGN))
    return block


def label_net_forward(x, w1, b1, w2, b2, *, block_batch=None):
    """Label_net forward pass as a single Pallas kernel.

    x  : (B, label_dim) float32
    w1 : (label_dim, 512), b1 : (1, 512) or (512,)
    w2 : (512, bit),       b2 : (1, bit) or (bit,)
    returns (B, bit) float32
    """
    B, label_dim = x.shape
    hidden = w1.shape[1]
    bit = w2.shape[1]

    b1 = jnp.reshape(b1, (1, hidden)).astype(jnp.float32)
    b2 = jnp.reshape(b2, (1, bit)).astype(jnp.float32)

    # --- batch tiling -------------------------------------------------------
    if block_batch is None:
        # ~4096-row target: amortizes per-step overhead while keeping the
        # per-tile working set (~20 MiB incl. f32 h) well inside v7x's 64 MiB.
        block_batch = _choose_block_batch(B, target=4096)
    else:
        block_batch = max(_ROW_ALIGN, _round_up(block_batch, _ROW_ALIGN))

    B_pad = _round_up(B, block_batch)
    if B_pad != B:
        x = jnp.pad(x, ((0, B_pad - B), (0, 0)))

    # --- bf16 MXU weights (cast once per call; x is cast inside the kernel) -
    x_f32 = x.astype(jnp.float32)
    w1_bf = w1.astype(jnp.bfloat16)
    w2_bf = w2.astype(jnp.bfloat16)

    grid = (B_pad // block_batch,)

    # --- VMEM budget (lane-padded blocks, double-buffered x/out, resident w) -
    ld_lanes = _round_up(label_dim, _LANE)
    bit_lanes = _round_up(bit, _LANE)
    bytes_x = 2 * block_batch * ld_lanes * 4                      # f32 x, 2 bufs
    bytes_out = 2 * block_batch * bit_lanes * 4                   # f32 out, 2 bufs
    bytes_w = (_round_up(label_dim, 16) * hidden + hidden * bit_lanes) * 2 \
              + (hidden + bit_lanes) * 4                          # bf16 W + f32 b
    bytes_h = block_batch * hidden * (4 + 2) \
              + block_batch * ld_lanes * 2                        # f32 h + bf16 h + bf16 x
    vmem_limit = int(min(max(bytes_x + bytes_out + bytes_w + bytes_h + (8 << 20),
                             32 << 20), 48 << 20))

    cost = pl.CostEstimate(
        flops=2 * B_pad * (label_dim * hidden + hidden * bit),
        transcendentals=B_pad * bit,
        bytes_accessed=(x_f32.size * 4 + w1_bf.size * 2 + w2_bf.size * 2
                        + b1.size * 4 + b2.size * 4 + B_pad * bit * 4),
    )

    out = pl.pallas_call(
        _label_net_kernel,
        out_shape=jax.ShapeDtypeStruct((B_pad, bit), jnp.float32),
        grid_spec=pltpu.PrefetchScalarGridSpec(
            num_scalar_prefetch=0,
            grid=grid,
            in_specs=[
                pl.BlockSpec((block_batch, label_dim), lambda i: (i, 0)),
                pl.BlockSpec((label_dim, hidden), lambda i: (0, 0)),
                pl.BlockSpec((1, hidden), lambda i: (0, 0)),
                pl.BlockSpec((hidden, bit), lambda i: (0, 0)),
                pl.BlockSpec((1, bit), lambda i: (0, 0)),
            ],
            out_specs=pl.BlockSpec((block_batch, bit), lambda i: (i, 0)),
        ),
        compiler_params=pltpu.CompilerParams(
            dimension_semantics=("parallel",),
            vmem_limit_bytes=vmem_limit,
        ),
        cost_estimate=cost,
    )(x_f32, w1_bf, b1, w2_bf, b2)

    return out[:B]


def init_label_net_params(key, label_dim, bit, hidden=_HIDDEN):
    """Deterministic init matching PyTorch nn.Linear default:
    weights and biases ~ U(-1/sqrt(fan_in), 1/sqrt(fan_in))."""
    k1, k2, k3, k4 = jax.random.split(key, 4)
    bound1 = 1.0 / jnp.sqrt(jnp.float32(label_dim))
    bound2 = 1.0 / jnp.sqrt(jnp.float32(hidden))
    # Stored as (in_features, out_features) so the kernel does x @ W.
    w1 = jax.random.uniform(k1, (label_dim, hidden), jnp.float32, -bound1, bound1)
    b1 = jax.random.uniform(k2, (1, hidden), jnp.float32, -bound1, bound1)
    w2 = jax.random.uniform(k3, (hidden, bit), jnp.float32, -bound2, bound2)
    b2 = jax.random.uniform(k4, (1, bit), jnp.float32, -bound2, bound2)
    return w1, b1, w2, b2


if __name__ == "__main__":
    # Small, deterministic example shapes consistent with the module:
    # batch=8 label vectors of dimension label_dim=24, producing bit=32 codes.
    batch, label_dim, bit = 8, 24, 32

    key = jax.random.PRNGKey(0)
    kx, kp = jax.random.split(key)
    x = jax.random.uniform(kx, (batch, label_dim), jnp.float32)
    w1, b1, w2, b2 = init_label_net_params(kp, label_dim, bit)

    y = label_net_forward(x, w1, b1, w2, b2)
    y = jax.block_until_ready(y)
    assert y.shape == (batch, bit)

    # Reference mimicking the kernel's bf16-input / f32-accumulation math.
    xb = x.astype(jnp.bfloat16).astype(jnp.float32)
    w1b = w1.astype(jnp.bfloat16).astype(jnp.float32)
    w2b = w2.astype(jnp.bfloat16).astype(jnp.float32)
    h = jnp.maximum(xb @ w1b + b1, 0.0)
    hb = h.astype(jnp.bfloat16).astype(jnp.float32)
    ref_bf16 = jnp.tanh(hb @ w2b + b2)
    assert jnp.allclose(y, ref_bf16, atol=2e-2, rtol=2e-2)

    # Sanity check against the full-f32 PyTorch-equivalent math (looser tol
    # since the kernel uses bf16 MXU inputs).
    ref_f32 = jnp.tanh(jnp.maximum(x @ w1 + b1, 0.0) @ w2 + b2)
    assert jnp.allclose(y, ref_f32, atol=5e-2, rtol=5e-2)

    # Also exercise a ragged, multi-tile batch to validate the balance-chosen
    # tiling path (forces grid >= 2 and row padding).
    B2 = 70
    x2 = jax.random.uniform(jax.random.PRNGKey(1), (B2, label_dim), jnp.float32)
    y2 = jax.block_until_ready(label_net_forward(x2, w1, b1, w2, b2))
    ref2 = jnp.tanh(jnp.maximum(x2 @ w1 + b1, 0.0) @ w2 + b2)
    assert y2.shape == (B2, bit)
    assert jnp.allclose(y2, ref2, atol=5e-2, rtol=5e-2)

    print("KERNEL_OK")
</pallas_src>

<mosaic_0001>
module attributes {stable_mosaic.version = 11 : i64} {
  func.func @_label_net_kernel(%arg0: i32, %arg1: memref<16x24xf32, #tpu.memory_space<vmem>>, %arg2: memref<24x512xbf16, #tpu.memory_space<vmem>>, %arg3: memref<1x512xf32, #tpu.memory_space<vmem>>, %arg4: memref<512x32xbf16, #tpu.memory_space<vmem>>, %arg5: memref<1x32xf32, #tpu.memory_space<vmem>>, %arg6: memref<16x32xf32, #tpu.memory_space<vmem>>) attributes {dimension_semantics = [#tpu.dimension_semantics<parallel>], iteration_bounds = array<i64: 1>, scalar_prefetch = 0 : i64, scratch_operands = 0 : i64, tpu.core_type = #tpu.core_type<tc>, window_params = [{transform_indices = @transform_0, window_bounds = array<i64: 16, 24>}, {pipeline_mode = #tpu.pipeline_mode<synchronous>, transform_indices = @transform_1, window_bounds = array<i64: 24, 512>}, {pipeline_mode = #tpu.pipeline_mode<synchronous>, transform_indices = @transform_2, window_bounds = array<i64: 1, 512>}, {pipeline_mode = #tpu.pipeline_mode<synchronous>, transform_indices = @transform_3, window_bounds = array<i64: 512, 32>}, {pipeline_mode = #tpu.pipeline_mode<synchronous>, transform_indices = @transform_4, window_bounds = array<i64: 1, 32>}, {transform_indices = @transform_5, window_bounds = array<i64: 16, 32>}]} {
    %c0 = arith.constant 0 : index
    %c0_0 = arith.constant 0 : index
    %0 = vector.load %arg1[%c0, %c0_0] : memref<16x24xf32, #tpu.memory_space<vmem>>, vector<16x24xf32>
    %1 = arith.truncf %0 : vector<16x24xf32> to vector<16x24xbf16>
    %c0_1 = arith.constant 0 : index
    %c0_2 = arith.constant 0 : index
    %2 = vector.load %arg2[%c0_1, %c0_2] : memref<24x512xbf16, #tpu.memory_space<vmem>>, vector<24x512xbf16>
    %cst = arith.constant dense<0.000000e+00> : vector<16x512xf32>
    %3 = tpu.matmul %1, %2, %cst {dimension_numbers = #tpu.dot_dimension_numbers<[1], [0], [0], [1], [0, 0, 1, 1], [], []>} : vector<16x24xbf16>, vector<24x512xbf16>, vector<16x512xf32> -> vector<16x512xf32>
    %c0_3 = arith.constant 0 : index
    %c0_4 = arith.constant 0 : index
    %4 = vector.load %arg3[%c0_3, %c0_4] : memref<1x512xf32, #tpu.memory_space<vmem>>, vector<1x512xf32>
    %5 = vector.broadcast %4 : vector<1x512xf32> to vector<16x512xf32>
    %6 = arith.addf %3, %5 : vector<16x512xf32>
    %cst_5 = arith.constant 0.000000e+00 : f32
    %7 = vector.broadcast %cst_5 : f32 to vector<16x512xf32>
    %8 = arith.maximumf %6, %7 : vector<16x512xf32>
    %9 = arith.truncf %8 : vector<16x512xf32> to vector<16x512xbf16>
    %c0_6 = arith.constant 0 : index
    %c0_7 = arith.constant 0 : index
    %10 = vector.load %arg4[%c0_6, %c0_7] : memref<512x32xbf16, #tpu.memory_space<vmem>>, vector<512x32xbf16>
    %cst_8 = arith.constant dense<0.000000e+00> : vector<16x32xf32>
    %11 = tpu.matmul %9, %10, %cst_8 {dimension_numbers = #tpu.dot_dimension_numbers<[1], [0], [0], [1], [0, 0, 1, 1], [], []>} : vector<16x512xbf16>, vector<512x32xbf16>, vector<16x32xf32> -> vector<16x32xf32>
    %c0_9 = arith.constant 0 : index
    %c0_10 = arith.constant 0 : index
    %12 = vector.load %arg5[%c0_9, %c0_10] : memref<1x32xf32, #tpu.memory_space<vmem>>, vector<1x32xf32>
    %13 = vector.broadcast %12 : vector<1x32xf32> to vector<16x32xf32>
    %14 = arith.addf %11, %13 : vector<16x32xf32>
    %15 = math.tanh %14 : vector<16x32xf32>
    %c0_11 = arith.constant 0 : index
    %c0_12 = arith.constant 0 : index
    %16 = vector.load %arg6[%c0_11, %c0_12] : memref<16x32xf32, #tpu.memory_space<vmem>>, vector<16x32xf32>
    tpu.vector_store %arg6[%c0_11, %c0_12], %15 {strides = array<i32>} : memref<16x32xf32, #tpu.memory_space<vmem>>, vector<16x32xf32>,
    return
  }
  func.func @transform_0(%arg0: i32) -> (i32, i32) {
    %c0_i32 = arith.constant 0 : i32
    %c0_i32_0 = arith.constant 0 : i32
    return %arg0, %c0_i32 : i32, i32
  }
  func.func @transform_1(%arg0: i32) -> (i32, i32) {
    %c0_i32 = arith.constant 0 : i32
    %c0_i32_0 = arith.constant 0 : i32
    %c0_i32_1 = arith.constant 0 : i32
    return %c0_i32, %c0_i32_0 : i32, i32
  }
  func.func @transform_2(%arg0: i32) -> (i32, i32) {
    %c0_i32 = arith.constant 0 : i32
    %c0_i32_0 = arith.constant 0 : i32
    %c0_i32_1 = arith.constant 0 : i32
    return %c0_i32, %c0_i32_0 : i32, i32
  }
  func.func @transform_3(%arg0: i32) -> (i32, i32) {
    %c0_i32 = arith.constant 0 : i32
    %c0_i32_0 = arith.constant 0 : i32
    %c0_i32_1 = arith.constant 0 : i32
    return %c0_i32, %c0_i32_0 : i32, i32
  }
  func.func @transform_4(%arg0: i32) -> (i32, i32) {
    %c0_i32 = arith.constant 0 : i32
    %c0_i32_0 = arith.constant 0 : i32
    %c0_i32_1 = arith.constant 0 : i32
    return %c0_i32, %c0_i32_0 : i32, i32
  }
  func.func @transform_5(%arg0: i32) -> (i32, i32) {
    %c0_i32 = arith.constant 0 : i32
    %c0_i32_0 = arith.constant 0 : i32
    return %arg0, %c0_i32 : i32, i32
  }
}

</mosaic_0001>

<llo_original>
// kernel: tpu_custom_call.1
$region0: #{tpu_custom_call.1}
  #allocation0 [shape = 'u32[]', space=smem, size = 0x4, offset = 0x4, fixed_abs, tag = 'smem constant byte address 0x4 - core index']
  #allocation1 [shape = 'u32[144,128]{1,0:T(1,128)}', space=vmem, size = 0x12000, scoped, tag = 'internal scratch']
  %s0 = inlined_call_operand.vmem [shape: f32[16,24], index: 0, kind: input, shape index: {}]
  %s1 = inlined_call_operand.vmem [shape: bf16[24,512], index: 1, kind: input, shape index: {}]
  %s2 = inlined_call_operand.vmem [shape: f32[1,512], index: 2, kind: input, shape index: {}]
  %s3 = inlined_call_operand.vmem [shape: bf16[512,32], index: 3, kind: input, shape index: {}]
  %s4 = inlined_call_operand.vmem [shape: f32[1,32], index: 4, kind: input, shape index: {}]
  %s5 = inlined_call_operand.hbm [shape: f32[16,32], index: 5, kind: output, shape index: {}]
  %s6 = sld [smem:[#allocation0]]
  $region30: #{tpu_custom_call.1} parent=0
    _
  %s8 = ssub.s32 1, %s6
  %s9 = scalar_select 0, %s8, %s6
  $region1: #{tpu_custom_call.1} parent=0
    #allocation2 [shape = 'u8[8192]{0}', space=vmem, size = 0x2000, scoped, tag = 'output window, operand 0, single buffered']
    #allocation3 [shape = 's32[1]{0}', space=sflag, size = 0x4, scoped, tag = 'scoped memory for tpu_custom_call.1']
    %10 = vsyncpa [#allocation3], 0
    // Predicated region
    $region2: #{tpu_custom_call.1} parent=1 // pred_check
      _
    $region3: #{tpu_custom_call.1} parent=1 // pred_check_branch
      %12 = sbr.rel (0) target = $region5
    $region4: #{tpu_custom_call.1} parent=1 // pred_region
      _
    $region5: #{tpu_custom_call.1} parent=1 // pred_fallthru
      _
    // Predicated region
    $region6: #{tpu_custom_call.1} parent=1 // pred_check
      _
    $region7: #{tpu_custom_call.1} parent=1 // pred_check_branch
      %14 = sbr.rel (0) target = $region9
    $region8: #{tpu_custom_call.1} parent=1 // pred_region
      _
    $region9: #{tpu_custom_call.1} parent=1 // pred_fallthru
      _
    // Predicated region
    $region10: #{tpu_custom_call.1} parent=1 // pred_check
      _
    $region11: #{tpu_custom_call.1} parent=1 // pred_check_branch
      %16 = sbr.rel (0) target = $region13
    $region12: #{tpu_custom_call.1} parent=1 // pred_region
      _
    $region13: #{tpu_custom_call.1} parent=1 // pred_fallthru
      _
    // Predicated region
    $region14: #{tpu_custom_call.1} parent=1 // pred_check
      _
    $region15: #{tpu_custom_call.1} parent=1 // pred_check_branch
      %18 = sbr.rel (0) target = $region17
    $region16: #{tpu_custom_call.1} parent=1 // pred_region
      _
    $region17: #{tpu_custom_call.1} parent=1 // pred_fallthru
      _
    // Predicated region
    $region18: #{tpu_custom_call.1} parent=1 // pred_check
      _
    $region19: #{tpu_custom_call.1} parent=1 // pred_check_branch
      %20 = sbr.rel (0) target = $region21
    $region20: #{tpu_custom_call.1} parent=1 // pred_region
      _
    $region21: #{tpu_custom_call.1} parent=1 // pred_fallthru
      _
    %v22 = vld [vmem:[%s0] sm:$0xff]
    %v23 = vld [vmem:[%s0 + $0x8] sm:$0xff]
    %v24 = vpack.c.bf16 %v23, %v22
    %v25 = vld [vmem:[%s1] sm:$0xff]
    %v26 = vld [vmem:[%s1 + $0x8] sm:$0xff]
    %v27 = vld [vmem:[%s1 + $0x10] sm:$0xff]
    %v28 = vld [vmem:[%s1 + $0x18] sm:$0xff]
    %v29 = vld [vmem:[%s1 + $0x20] sm:$0xff]
    %v30 = vld [vmem:[%s1 + $0x28] sm:$0xff]
    %v31 = vld [vmem:[%s2] sm:$0xf]
    %v33 = vlaneseq
    %v34 = vshrl.u32 %v33, 7
    %v35 = vsub.s32 0, %v34
    %v36 = vrot.slane %v31, %v35
    %v37 = vlaneseq
    %v38 = vshrl.u32 %v37, 7
    %v39 = vsub.s32 1, %v38
    %v40 = vrot.slane %v31, %v39
    %v41 = vlaneseq
    %v42 = vshrl.u32 %v41, 7
    %v43 = vsub.s32 2, %v42
    %v44 = vrot.slane %v31, %v43
    %v45 = vlaneseq
    %v46 = vshrl.u32 %v45, 7
    %v47 = vsub.s32 3, %v46
    %v48 = vrot.slane %v31, %v47
    %v59 = vunpack.c.l.b16 %v25
    %v60 = vunpack.c.h.b16 %v25
    %v61 = vunpack.c.l.b16 %v26
    %v62 = vunpack.c.h.b16 %v26
    %v63 = vunpack.c.l.b16 %v27
    %v64 = vunpack.c.h.b16 %v27
    %v65 = vunpack.c.l.b16 %v28
    %v66 = vunpack.c.h.b16 %v28
    %v67 = vunpack.c.l.b16 %v29
    %v68 = vunpack.c.h.b16 %v29
    %v69 = vunpack.c.l.b16 %v30
    %v70 = vunpack.c.h.b16 %v30
    %v71 = vpack.c.b16 %v63, %v59
    %v72 = vpack.c.b16 %v64, %v60
    %v73 = vpack.c.b16 %v65, %v61
    %v74 = vpack.c.b16 %v66, %v62
    %v75 = vpack.c.b16 %v67, %v67
    %v76 = vpack.c.b16 %v68, %v68
    %v77 = vpack.c.b16 %v69, %v69
    %v78 = vpack.c.b16 %v70, %v70
    %vm83 = vcmask 195584
    %v85 = vsel %vm83, %v24, 0
    %vm87 = vcmask 1043456
    %v89 = vsel %vm87, %v75, 0
    %v92 = vsel %vm87, %v76, 0
    %v95 = vsel %vm87, %v77, 0
    %v98 = vsel %vm87, %v78, 0
    %100 = vmatprep.subr.bf16.mxu0 0
    %101 = vmatpush1.bf16.msra.mxu0 0
    %102 = vmatprep.subr.bf16.mxu0 0
    %103 = vmatpush1.bf16.msra.mxu0 0
    %104 = vmatprep.subr.bf16.mxu0 0
    %105 = vmatpush1.bf16.msra.mxu0 0
    %106 = vmatprep.subr.bf16.mxu0 0
    %107 = vmatpush1.bf16.msra.mxu0 0
    %108 = vmatprep.subr.bf16.mxu0 0
    %109 = vmatpush1.bf16.msra.mxu0 0
    %110 = vmatprep.subr.bf16.mxu0 0
    %111 = vmatpush1.bf16.msra.mxu0 0
    %112 = vmatprep.subr.bf16.mxu0 %v92
    %113 = vmatpush1.bf16.msra.mxu0 %v89
    %114 = vmatprep.subr.bf16.mxu0 %v72
    %115 = vmatpush1.bf16.msra.mxu0 %v71
    %116 = vmatprep.subr.bf16.mxu0 0
    %117 = vmatpush2.bf16.msra.mxu0 0
    %118 = vmatprep.subr.bf16.mxu0 0
    %119 = vmatpush2.bf16.msra.mxu0 0
    %120 = vmatprep.subr.bf16.mxu0 0
    %121 = vmatpush2.bf16.msra.mxu0 0
    %122 = vmatprep.subr.bf16.mxu0 0
    %123 = vmatpush2.bf16.msra.mxu0 0
    %124 = vmatprep.subr.bf16.mxu0 0
    %125 = vmatpush2.bf16.msra.mxu0 0
    %126 = vmatprep.subr.bf16.mxu0 0
    %127 = vmatpush2.bf16.msra.mxu0 0
    %128 = vmatprep.subr.bf16.mxu0 0
    %129 = vmatpush2.bf16.msra.mxu0 0
    %130 = vmatprep.subr.bf16.mxu0 0
    %131 = vmatpush2.bf16.msra.mxu0 0
    %132 = vmatprep.mubr.bf16.mxu0 0
    %133 = vmatmul.mubr.bf16.gmra.mxu0 %v85
    %v134 = vpop.f32.mrf.mxu0
    %v135 = vadd.f32 %v36, %v134
    %v136 = vpop.f32.mrf.mxu0
    %v137 = vadd.f32 %v40, %v136
    %v138 = vpop.f32.mrf.mxu0
    %v139 = vadd.f32 %v36, %v138
    %v140 = vpop.f32.mrf.mxu0
    %v141 = vadd.f32 %v40, %v140
    %142 = vdwg.mxu0
    %143 = vmatprep.subr.bf16.mxu0 0
    %144 = vmatpush1.bf16.msra.mxu0 0
    %145 = vmatprep.subr.bf16.mxu0 0
    %146 = vmatpush1.bf16.msra.mxu0 0
    %147 = vmatprep.subr.bf16.mxu0 0
    %148 = vmatpush1.bf16.msra.mxu0 0
    %149 = vmatprep.subr.bf16.mxu0 0
    %150 = vmatpush1.bf16.msra.mxu0 0
    %151 = vmatprep.subr.bf16.mxu0 0
    %152 = vmatpush1.bf16.msra.mxu0 0
    %153 = vmatprep.subr.bf16.mxu0 0
    %154 = vmatpush1.bf16.msra.mxu0 0
    %155 = vmatprep.subr.bf16.mxu0 %v98
    %156 = vmatpush1.bf16.msra.mxu0 %v95
    %157 = vmatprep.subr.bf16.mxu0 %v74
    %158 = vmatpush1.bf16.msra.mxu0 %v73
    %159 = vmatprep.subr.bf16.mxu0 0
    %160 = vmatpush2.bf16.msra.mxu0 0
    %161 = vmatprep.subr.bf16.mxu0 0
    %162 = vmatpush2.bf16.msra.mxu0 0
    %163 = vmatprep.subr.bf16.mxu0 0
    %164 = vmatpush2.bf16.msra.mxu0 0
    %165 = vmatprep.subr.bf16.mxu0 0
    %166 = vmatpush2.bf16.msra.mxu0 0
    %167 = vmatprep.subr.bf16.mxu0 0
    %168 = vmatpush2.bf16.msra.mxu0 0
    %169 = vmatprep.subr.bf16.mxu0 0
    %170 = vmatpush2.bf16.msra.mxu0 0
    %171 = vmatprep.subr.bf16.mxu0 0
    %172 = vmatpush2.bf16.msra.mxu0 0
    %173 = vmatprep.subr.bf16.mxu0 0
    %174 = vmatpush2.bf16.msra.mxu0 0
    %175 = vmatprep.mubr.bf16.mxu0 0
    %176 = vmatmul.mubr.bf16.gmra.mxu0 %v85
    %v177 = vpop.f32.mrf.mxu0
    %v178 = vadd.f32 %v44, %v177
    %v179 = vpop.f32.mrf.mxu0
    %v180 = vadd.f32 %v48, %v179
    %v181 = vpop.f32.mrf.mxu0
    %v182 = vadd.f32 %v44, %v181
    %v183 = vpop.f32.mrf.mxu0
    %v184 = vadd.f32 %v48, %v183
    %185 = vdwg.mxu0
    %v186 = vmax.f32 %v135, 0.0
    %v187 = vmax.f32 %v137, 0.0
    %v188 = vmax.f32 %v178, 0.0
    %v189 = vmax.f32 %v180, 0.0
    %v190 = vmax.f32 %v139, 0.0
    %v191 = vmax.f32 %v141, 0.0
    %v192 = vmax.f32 %v182, 0.0
    %v193 = vmax.f32 %v184, 0.0
    %v194 = vpack.c.bf16 %v190, %v186
    %v195 = vpack.c.bf16 %v191, %v187
    %v196 = vpack.c.bf16 %v192, %v188
    %v197 = vpack.c.bf16 %v193, %v189
    %v198 = vld [vmem:[%s3] sm:$0xf]
    %v199 = vld [vmem:[%s3 + $0x4] sm:$0xf]
    %v200 = vld [vmem:[%s3 + $0x8] sm:$0xf]
    %v201 = vld [vmem:[%s3 + $0xc] sm:$0xf]
    %v202 = vld [vmem:[%s3 + $0x10] sm:$0xf]
    %v203 = vld [vmem:[%s3 + $0x14] sm:$0xf]
    %v204 = vld [vmem:[%s3 + $0x18] sm:$0xf]
    %v205 = vld [vmem:[%s3 + $0x1c] sm:$0xf]
    %v206 = vld [vmem:[%s3 + $0x20] sm:$0xf]
    %v207 = vld [vmem:[%s3 + $0x24] sm:$0xf]
    %v208 = vld [vmem:[%s3 + $0x28] sm:$0xf]
    %v209 = vld [vmem:[%s3 + $0x2c] sm:$0xf]
    %v210 = vld [vmem:[%s3 + $0x30] sm:$0xf]
    %v211 = vld [vmem:[%s3 + $0x34] sm:$0xf]
    %v212 = vld [vmem:[%s3 + $0x38] sm:$0xf]
    %v213 = vld [vmem:[%s3 + $0x3c] sm:$0xf]
    %v214 = vld [vmem:[%s3 + $0x40] sm:$0xf]
    %v215 = vld [vmem:[%s3 + $0x44] sm:$0xf]
    %v216 = vld [vmem:[%s3 + $0x48] sm:$0xf]
    %v217 = vld [vmem:[%s3 + $0x4c] sm:$0xf]
    %v218 = vld [vmem:[%s3 + $0x50] sm:$0xf]
    %v219 = vld [vmem:[%s3 + $0x54] sm:$0xf]
    %v220 = vld [vmem:[%s3 + $0x58] sm:$0xf]
    %v221 = vld [vmem:[%s3 + $0x5c] sm:$0xf]
    %v222 = vld [vmem:[%s3 + $0x60] sm:$0xf]
    %v223 = vld [vmem:[%s3 + $0x64] sm:$0xf]
    %v224 = vld [vmem:[%s3 + $0x68] sm:$0xf]
    %v225 = vld [vmem:[%s3 + $0x6c] sm:$0xf]
    %v226 = vld [vmem:[%s3 + $0x70] sm:$0xf]
    %v227 = vld [vmem:[%s3 + $0x74] sm:$0xf]
    %v228 = vld [vmem:[%s3 + $0x78] sm:$0xf]
    %v229 = vld [vmem:[%s3 + $0x7c] sm:$0xf]
    %v230 = vld [vmem:[%s3 + $0x80] sm:$0xf]
    %v231 = vld [vmem:[%s3 + $0x84] sm:$0xf]
    %v232 = vld [vmem:[%s3 + $0x88] sm:$0xf]
    %v233 = vld [vmem:[%s3 + $0x8c] sm:$0xf]
    %v234 = vld [vmem:[%s3 + $0x90] sm:$0xf]
    %v235 = vld [vmem:[%s3 + $0x94] sm:$0xf]
    %v236 = vld [vmem:[%s3 + $0x98] sm:$0xf]
    %v237 = vld [vmem:[%s3 + $0x9c] sm:$0xf]
    %v238 = vld [vmem:[%s3 + $0xa0] sm:$0xf]
    %v239 = vld [vmem:[%s3 + $0xa4] sm:$0xf]
    %v240 = vld [vmem:[%s3 + $0xa8] sm:$0xf]
    %v241 = vld [vmem:[%s3 + $0xac] sm:$0xf]
    %v242 = vld [vmem:[%s3 + $0xb0] sm:$0xf]
    %v243 = vld [vmem:[%s3 + $0xb4] sm:$0xf]
    %v244 = vld [vmem:[%s3 + $0xb8] sm:$0xf]
    %v245 = vld [vmem:[%s3 + $0xbc] sm:$0xf]
    %v246 = vld [vmem:[%s3 + $0xc0] sm:$0xf]
    %v247 = vld [vmem:[%s3 + $0xc4] sm:$0xf]
    %v248 = vld [vmem:[%s3 + $0xc8] sm:$0xf]
    %v249 = vld [vmem:[%s3 + $0xcc] sm:$0xf]
    %v250 = vld [vmem:[%s3 + $0xd0] sm:$0xf]
    %v251 = vld [vmem:[%s3 + $0xd4] sm:$0xf]
    %v252 = vld [vmem:[%s3 + $0xd8] sm:$0xf]
    %v253 = vld [vmem:[%s3 + $0xdc] sm:$0xf]
    %v254 = vld [vmem:[%s3 + $0xe0] sm:$0xf]
    %v255 = vld [vmem:[%s3 + $0xe4] sm:$0xf]
    %v256 = vld [vmem:[%s3 + $0xe8] sm:$0xf]
    %v257 = vld [vmem:[%s3 + $0xec] sm:$0xf]
    %v258 = vld [vmem:[%s3 + $0xf0] sm:$0xf]
    %v259 = vld [vmem:[%s3 + $0xf4] sm:$0xf]
    %v260 = vld [vmem:[%s3 + $0xf8] sm:$0xf]
    %v261 = vld [vmem:[%s3 + $0xfc] sm:$0xf]
    %v262 = vld [vmem:[%s4] sm:$0x1]
    %v264 = vlaneseq
    %v265 = vshrl.u32 %v264, 7
    %v266 = vsub.s32 0, %v265
    %v267 = vrot.slane %v262, %v266
    %v333 = vunpack.c.l.b16 %v198
    %v334 = vunpack.c.l.b16 %v199
    %v335 = vunpack.c.l.b16 %v200
    %v336 = vunpack.c.l.b16 %v201
    %v337 = vunpack.c.l.b16 %v202
    %v338 = vunpack.c.l.b16 %v203
    %v339 = vunpack.c.l.b16 %v204
    %v340 = vunpack.c.l.b16 %v205
    %v341 = vunpack.c.l.b16 %v206
    %v342 = vunpack.c.l.b16 %v207
    %v343 = vunpack.c.l.b16 %v208
    %v344 = vunpack.c.l.b16 %v209
    %v345 = vunpack.c.l.b16 %v210
    %v346 = vunpack.c.l.b16 %v211
    %v347 = vunpack.c.l.b16 %v212
    %v348 = vunpack.c.l.b16 %v213
    %v349 = vunpack.c.l.b16 %v214
    %v350 = vunpack.c.l.b16 %v215
    %v351 = vunpack.c.l.b16 %v216
    %v352 = vunpack.c.l.b16 %v217
    %v353 = vunpack.c.l.b16 %v218
    %v354 = vunpack.c.l.b16 %v219
    %v355 = vunpack.c.l.b16 %v220
    %v356 = vunpack.c.l.b16 %v221
    %v357 = vunpack.c.l.b16 %v222
    %v358 = vunpack.c.l.b16 %v223
    %v359 = vunpack.c.l.b16 %v224
    %v360 = vunpack.c.l.b16 %v225
    %v361 = vunpack.c.l.b16 %v226
    %v362 = vunpack.c.l.b16 %v227
    %v363 = vunpack.c.l.b16 %v228
    %v364 = vunpack.c.l.b16 %v229
    %v365 = vunpack.c.l.b16 %v230
    %v366 = vunpack.c.l.b16 %v231
    %v367 = vunpack.c.l.b16 %v232
    %v368 = vunpack.c.l.b16 %v233
    %v369 = vunpack.c.l.b16 %v234
    %v370 = vunpack.c.l.b16 %v235
    %v371 = vunpack.c.l.b16 %v236
    %v372 = vunpack.c.l.b16 %v237
    %v373 = vunpack.c.l.b16 %v238
    %v374 = vunpack.c.l.b16 %v239
    %v375 = vunpack.c.l.b16 %v240
    %v376 = vunpack.c.l.b16 %v241
    %v377 = vunpack.c.l.b16 %v242
    %v378 = vunpack.c.l.b16 %v243
    %v379 = vunpack.c.l.b16 %v244
    %v380 = vunpack.c.l.b16 %v245
    %v381 = vunpack.c.l.b16 %v246
    %v382 = vunpack.c.l.b16 %v247
    %v383 = vunpack.c.l.b16 %v248
    %v384 = vunpack.c.l.b16 %v249
    %v385 = vunpack.c.l.b16 %v250
    %v386 = vunpack.c.l.b16 %v251
    %v387 = vunpack.c.l.b16 %v252
    %v388 = vunpack.c.l.b16 %v253
    %v389 = vunpack.c.l.b16 %v254
    %v390 = vunpack.c.l.b16 %v255
    %v391 = vunpack.c.l.b16 %v256
    %v392 = vunpack.c.l.b16 %v257
    %v393 = vunpack.c.l.b16 %v258
    %v394 = vunpack.c.l.b16 %v259
    %v395 = vunpack.c.l.b16 %v260
    %v396 = vunpack.c.l.b16 %v261
    %v397 = vpack.c.b16 %v334, %v333
    %v398 = vpack.c.b16 %v336, %v335
    %v399 = vpack.c.b16 %v338, %v337
    %v400 = vpack.c.b16 %v340, %v339
    %v401 = vpack.c.b16 %v342, %v341
    %v402 = vpack.c.b16 %v344, %v343
    %v403 = vpack.c.b16 %v346, %v345
    %v404 = vpack.c.b16 %v348, %v347
    %v405 = vpack.c.b16 %v350, %v349
    %v406 = vpack.c.b16 %v352, %v351
    %v407 = vpack.c.b16 %v354, %v353
    %v408 = vpack.c.b16 %v356, %v355
    %v409 = vpack.c.b16 %v358, %v357
    %v410 = vpack.c.b16 %v360, %v359
    %v411 = vpack.c.b16 %v362, %v361
    %v412 = vpack.c.b16 %v364, %v363
    %v413 = vpack.c.b16 %v366, %v365
    %v414 = vpack.c.b16 %v368, %v367
    %v415 = vpack.c.b16 %v370, %v369
    %v416 = vpack.c.b16 %v372, %v371
    %v417 = vpack.c.b16 %v374, %v373
    %v418 = vpack.c.b16 %v376, %v375
    %v419 = vpack.c.b16 %v378, %v377
    %v420 = vpack.c.b16 %v380, %v379
    %v421 = vpack.c.b16 %v382, %v381
    %v422 = vpack.c.b16 %v384, %v383
    %v423 = vpack.c.b16 %v386, %v385
    %v424 = vpack.c.b16 %v388, %v387
    %v425 = vpack.c.b16 %v390, %v389
    %v426 = vpack.c.b16 %v392, %v391
    %v427 = vpack.c.b16 %v394, %v393
    %v428 = vpack.c.b16 %v396, %v395
    %461 = vmatprep.subr.bf16.mxu0 0
    %462 = vmatpush1.bf16.msra.mxu0 %v404
    %463 = vmatprep.subr.bf16.mxu0 0
    %464 = vmatpush1.bf16.msra.mxu0 %v403
    %465 = vmatprep.subr.bf16.mxu0 0
    %466 = vmatpush1.bf16.msra.mxu0 %v402
    %467 = vmatprep.subr.bf16.mxu0 0
    %468 = vmatpush1.bf16.msra.mxu0 %v401
    %469 = vmatprep.subr.bf16.mxu0 0
    %470 = vmatpush1.bf16.msra.mxu0 %v400
    %471 = vmatprep.subr.bf16.mxu0 0
    %472 = vmatpush1.bf16.msra.mxu0 %v399
    %473 = vmatprep.subr.bf16.mxu0 0
    %474 = vmatpush1.bf16.msra.mxu0 %v398
    %475 = vmatprep.subr.bf16.mxu0 0
    %476 = vmatpush1.bf16.msra.mxu0 %v397
    %477 = vmatprep.subr.bf16.mxu0 0
    %478 = vmatpush2.bf16.msra.mxu0 %v412
    %479 = vmatprep.subr.bf16.mxu0 0
    %480 = vmatpush2.bf16.msra.mxu0 %v411
    %481 = vmatprep.subr.bf16.mxu0 0
    %482 = vmatpush2.bf16.msra.mxu0 %v410
    %483 = vmatprep.subr.bf16.mxu0 0
    %484 = vmatpush2.bf16.msra.mxu0 %v409
    %485 = vmatprep.subr.bf16.mxu0 0
    %486 = vmatpush2.bf16.msra.mxu0 %v408
    %487 = vmatprep.subr.bf16.mxu0 0
    %488 = vmatpush2.bf16.msra.mxu0 %v407
    %489 = vmatprep.subr.bf16.mxu0 0
    %490 = vmatpush2.bf16.msra.mxu0 %v406
    %491 = vmatprep.subr.bf16.mxu0 0
    %492 = vmatpush2.bf16.msra.mxu0 %v405
    %493 = vmatprep.mubr.bf16.mxu0 %v195
    %494 = vmatmul.mubr.bf16.gmra.mxu0 %v194
    %v495 = vpop.f32.mrf.mxu0
    %v496 = vadd.f32 %v267, %v495
    %v497 = vpop.f32.mrf.mxu0
    %v498 = vpop.f32.mrf.mxu0
    %v499 = vadd.f32 %v267, %v498
    %v500 = vpop.f32.mrf.mxu0
    %501 = vdwg.mxu0
    %502 = vmatprep.subr.bf16.mxu0 0
    %503 = vmatpush1.bf16.msra.mxu0 %v420
    %504 = vmatprep.subr.bf16.mxu0 0
    %505 = vmatpush1.bf16.msra.mxu0 %v419
    %506 = vmatprep.subr.bf16.mxu0 0
    %507 = vmatpush1.bf16.msra.mxu0 %v418
    %508 = vmatprep.subr.bf16.mxu0 0
    %509 = vmatpush1.bf16.msra.mxu0 %v417
    %510 = vmatprep.subr.bf16.mxu0 0
    %511 = vmatpush1.bf16.msra.mxu0 %v416
    %512 = vmatprep.subr.bf16.mxu0 0
    %513 = vmatpush1.bf16.msra.mxu0 %v415
    %514 = vmatprep.subr.bf16.mxu0 0
    %515 = vmatpush1.bf16.msra.mxu0 %v414
    %516 = vmatprep.subr.bf16.mxu0 0
    %517 = vmatpush1.bf16.msra.mxu0 %v413
    %518 = vmatprep.subr.bf16.mxu0 0
    %519 = vmatpush2.bf16.msra.mxu0 %v428
    %520 = vmatprep.subr.bf16.mxu0 0
    %521 = vmatpush2.bf16.msra.mxu0 %v427
    %522 = vmatprep.subr.bf16.mxu0 0
    %523 = vmatpush2.bf16.msra.mxu0 %v426
    %524 = vmatprep.subr.bf16.mxu0 0
    %525 = vmatpush2.bf16.msra.mxu0 %v425
    %526 = vmatprep.subr.bf16.mxu0 0
    %527 = vmatpush2.bf16.msra.mxu0 %v424
    %528 = vmatprep.subr.bf16.mxu0 0
    %529 = vmatpush2.bf16.msra.mxu0 %v423
    %530 = vmatprep.subr.bf16.mxu0 0
    %531 = vmatpush2.bf16.msra.mxu0 %v422
    %532 = vmatprep.subr.bf16.mxu0 0
    %533 = vmatpush2.bf16.msra.mxu0 %v421
    %534 = vmatprep.mubr.bf16.mxu0 %v197
    %535 = vmatmul.mubr.bf16.gmra.mxu0 %v196
    %v536 = vpop.f32.mrf.mxu0
    %v537 = vadd.f32 %v496, %v536
    %v538 = vpop.f32.mrf.mxu0
    %v539 = vpop.f32.mrf.mxu0
    %v540 = vadd.f32 %v499, %v539
    %v541 = vpop.f32.mrf.mxu0
    %542 = vdwg.mxu0
    %v543 = vtanh.pop %v537
    %v544 = vtanh.pop %v540
    %vm545 = vcmask 261120
    %546 = vst.msk [vmem:[#allocation2] sm:$0xff] %vm545, %v543
    %547 = vst.msk [vmem:[#allocation2 + $0x8] sm:$0xff] %vm545, %v544
    // Predicated region
    $region22: #{tpu_custom_call.1} parent=1 // pred_check
      _
    $region23: #{tpu_custom_call.1} parent=1 // pred_check_branch
      %549 = sbr.rel (0) target = $region25
    $region24: #{tpu_custom_call.1} parent=1 // pred_region
      %s551 = ssub.s32 256, 256
      %552 = vsyncadd [#allocation3], %s551
      %s553 = sshll.u32 [#allocation2], 4
      %s554 = int_to_ptr.vmem [resolvable:$true] %s553
      %559 = dma.vmem_to_hbm [thread:$0]  %s554, 256, %s5, [#allocation3], 128, 128, 8
    $region25: #{tpu_custom_call.1} parent=1 // pred_fallthru
      _
    // Predicated region
    $region26: #{tpu_custom_call.1} parent=1 // pred_check
      _
    $region27: #{tpu_custom_call.1} parent=1 // pred_check_branch
      %561 = sbr.rel (0) target = $region29
    $region28: #{tpu_custom_call.1} parent=1 // pred_region
      %562 = dma.done [#allocation3], 256
    $region29: #{tpu_custom_call.1} parent=1 // pred_fallthru
      _
    %563 = vsyncpa [#allocation3], 1

</llo_original>
